<compile_context>
chip_gen: v7x
topology: tpu7x:2x2x1
jax: 0.10.0
libtpu: 0.0.40
codegen_flags: <defaults>
</compile_context>

<pallas_src>
import functools

import jax
import jax.numpy as jnp
from jax.experimental import pallas as pl
from jax.experimental.pallas import tpu as pltpu


def _fused_conv_bn_relu_kernel(lhs_ref, w_ref, sel_ref, selT_ref,
                               gamma_ref, beta_ref, out_ref, *, inv_m, eps):
    """One pass: conv (single MXU dot) -> batch stats -> scale/shift -> ReLU."""
    # Conv as a single banded matmul: (N*H, KH*Wp*Cin) @ (KH*Wp*Cin, W*Cout), f32 acc.
    acc = jnp.dot(lhs_ref[...], w_ref[...], preferred_element_type=jnp.float32)

    # Per-channel mean over (N, H, W): per-lane sublane-sum, then lanes -> channels
    # via a tiny selector matmul (lane = xo*Cout + co). Avoids in-kernel reshapes.
    s1_lane = jnp.sum(acc, axis=0, keepdims=True)                    # (1, W*Cout)
    mean_ch = jnp.dot(s1_lane, sel_ref[...],
                      preferred_element_type=jnp.float32) * inv_m    # (1, Cout)
    mean_lane = jnp.dot(mean_ch, selT_ref[...],
                        preferred_element_type=jnp.float32)          # (1, W*Cout)

    # Centered variance (biased, as PyTorch uses for training-mode normalization).
    centered = acc - mean_lane
    s2_lane = jnp.sum(centered * centered, axis=0, keepdims=True)    # (1, W*Cout)
    var_ch = jnp.dot(s2_lane, sel_ref[...],
                     preferred_element_type=jnp.float32) * inv_m     # (1, Cout)
    inv_std = jax.lax.rsqrt(var_ch + eps)                            # (1, Cout)

    scale_ch = gamma_ref[...] * inv_std                              # (1, Cout)
    scale_lane = jnp.dot(scale_ch, selT_ref[...],
                         preferred_element_type=jnp.float32)         # (1, W*Cout)
    beta_lane = jnp.dot(beta_ref[...], selT_ref[...],
                        preferred_element_type=jnp.float32)          # (1, W*Cout)

    y = centered * scale_lane + beta_lane                            # broadcasts over rows
    out_ref[...] = jnp.maximum(y, 0.0).astype(out_ref.dtype)


def conv_block_forward(x_nchw, weight, gamma, beta, *, stride=1, padding=1, eps=1e-5):
    """x_nchw: (N, Cin, H, W); weight: (Cout, Cin, KH, KW) (PyTorch layouts)."""
    N, Cin, H, W = x_nchw.shape
    Cout, Cin_w, KH, KW = weight.shape
    assert Cin_w == Cin and KH == KW
    assert stride == 1 and 2 * padding == KH - 1, "implements 'same' conv, stride 1"

    Hp = H + 2 * padding
    Wp = W + 2 * padding
    lanes = W * Cout                   # kernel lane width (128 for W=16, Cout=8)
    Kc = KH * Wp * Cin                 # fused contraction width (216)
    M = N * H                          # stacked MXU rows (32)

    # ---- glue (tiny, fused by XLA under jit): NHWC + zero pad + fused-KH LHS ----
    x_nhwc = jnp.transpose(x_nchw, (0, 2, 3, 1))                      # (N,H,W,Cin)
    xp = jnp.pad(x_nhwc, ((0, 0), (padding, padding), (padding, padding), (0, 0)))
    xp_rows = xp.reshape(N, Hp, Wp * Cin)                             # (N,Hp,Wp*Cin)
    lhs = jnp.concatenate([xp_rows[:, kh:kh + H, :] for kh in range(KH)], axis=-1)
    lhs = lhs.reshape(M, Kc).astype(jnp.bfloat16)                     # (N*H, KH*Wp*Cin)

    # ---- banded weight, built vectorized in one shot ----
    # bigw[kh*Wp*Cin + p*Cin + ci, xo*Cout + co] = weight[co,ci,kh,kw] iff p == xo+kw
    w_t = jnp.transpose(weight, (2, 3, 1, 0)).astype(jnp.float32)     # (KH,KW,Cin,Cout)
    p_i = jnp.arange(Wp)[None, :, None]
    xo_i = jnp.arange(W)[None, None, :]
    kw_i = jnp.arange(KW)[:, None, None]
    band = (p_i == xo_i + kw_i).astype(jnp.float32)                   # (KW, Wp, W)
    bigw = (w_t[:, :, None, :, None, :] * band[None, :, :, None, :, None]).sum(axis=1)
    bigw = bigw.reshape(Kc, lanes).astype(jnp.bfloat16)               # (Kc, W*Cout)

    # ---- lane <-> channel selectors (lane = xo*Cout + co) ----
    sel = jnp.tile(jnp.eye(Cout, dtype=jnp.float32), (W, 1))          # (lanes, Cout)
    selT = sel.T                                                      # (Cout, lanes)

    gamma2 = gamma.reshape(1, Cout).astype(jnp.float32)
    beta2 = beta.reshape(1, Cout).astype(jnp.float32)

    kernel = functools.partial(_fused_conv_bn_relu_kernel,
                               inv_m=1.0 / float(N * H * W), eps=float(eps))

    out_rows = pl.pallas_call(
        kernel,
        out_shape=jax.ShapeDtypeStruct((M, lanes), jnp.float32),
        in_specs=[pl.BlockSpec(memory_space=pltpu.MemorySpace.VMEM)] * 6,
        out_specs=pl.BlockSpec(memory_space=pltpu.MemorySpace.VMEM),
        cost_estimate=pl.CostEstimate(
            flops=2 * M * Kc * lanes + 8 * M * lanes,
            transcendentals=Cout,
            bytes_accessed=(M * Kc + Kc * lanes) * 2
                           + (M * lanes + 2 * lanes * Cout + 2 * Cout) * 4),
    )(lhs, bigw, sel, selT, gamma2, beta2)

    # ---- glue: back to NCHW like the PyTorch module ----
    out_nhwc = out_rows.reshape(N, H, W, Cout)
    return jnp.transpose(out_nhwc, (0, 3, 1, 2))


if __name__ == "__main__":
    # Small shapes consistent with the module: batch=2, Cin=4, 16x16 spatial, Cout=8.
    N, Cin, H, W = 2, 4, 16, 16
    Cout, KH, KW = 8, 3, 3

    key = jax.random.PRNGKey(0)
    kx, kw = jax.random.split(key)
    x = jax.random.normal(kx, (N, Cin, H, W), dtype=jnp.float32)
    fan_in = Cin * KH * KW
    weight = jax.random.normal(kw, (Cout, Cin, KH, KW), dtype=jnp.float32) / jnp.sqrt(fan_in)
    gamma = jnp.ones((Cout,), dtype=jnp.float32)   # bn.weight
    beta = jnp.zeros((Cout,), dtype=jnp.float32)   # bn.bias

    fwd = jax.jit(conv_block_forward)
    out = fwd(x, weight, gamma, beta)
    jax.block_until_ready(out)

    # Pure-JAX f32 reference (training-mode BN, biased var, eps=1e-5).
    ref_conv = jax.lax.conv_general_dilated(
        x, weight, window_strides=(1, 1), padding=((1, 1), (1, 1)),
        dimension_numbers=("NCHW", "OIHW", "NCHW"))
    mu = jnp.mean(ref_conv, axis=(0, 2, 3), keepdims=True)
    var = jnp.mean((ref_conv - mu) ** 2, axis=(0, 2, 3), keepdims=True)
    ref = jnp.maximum((ref_conv - mu) * jax.lax.rsqrt(var + 1e-5)
                      * gamma.reshape(1, -1, 1, 1) + beta.reshape(1, -1, 1, 1), 0.0)

    assert out.shape == (N, Cout, H, W)
    err = float(jnp.max(jnp.abs(out - ref)))
    # Tolerance accounts for bf16 MXU inputs (f32 accumulation / f32 BN math).
    assert err < 3e-2, f"mismatch vs reference: max abs err = {err}"

    print("KERNEL_OK")
</pallas_src>

<mosaic_0001>
module attributes {stable_mosaic.version = 11 : i64} {
  func.func @_fused_conv_bn_relu_kernel(%arg0: memref<32x216xbf16, #tpu.memory_space<vmem>>, %arg1: memref<216x128xbf16, #tpu.memory_space<vmem>>, %arg2: memref<128x8xf32, #tpu.memory_space<vmem>>, %arg3: memref<8x128xf32, #tpu.memory_space<vmem>>, %arg4: memref<1x8xf32, #tpu.memory_space<vmem>>, %arg5: memref<1x8xf32, #tpu.memory_space<vmem>>, %arg6: memref<32x128xf32, #tpu.memory_space<vmem>>) attributes {dimension_semantics = [], scalar_prefetch = 0 : i64, scratch_operands = 0 : i64, tpu.core_type = #tpu.core_type<tc>} {
    %c0 = arith.constant 0 : index
    %c0_0 = arith.constant 0 : index
    %0 = vector.load %arg0[%c0, %c0_0] : memref<32x216xbf16, #tpu.memory_space<vmem>>, vector<32x216xbf16>
    %c0_1 = arith.constant 0 : index
    %c0_2 = arith.constant 0 : index
    %1 = vector.load %arg1[%c0_1, %c0_2] : memref<216x128xbf16, #tpu.memory_space<vmem>>, vector<216x128xbf16>
    %cst = arith.constant dense<0.000000e+00> : vector<32x128xf32>
    %2 = tpu.matmul %0, %1, %cst {dimension_numbers = #tpu.dot_dimension_numbers<[1], [0], [0], [1], [0, 0, 1, 1], [], []>} : vector<32x216xbf16>, vector<216x128xbf16>, vector<32x128xf32> -> vector<32x128xf32>
    %cst_3 = arith.constant dense<0.000000e+00> : vector<128xf32>
    %3 = vector.multi_reduction <add>, %2, %cst_3 [0] : vector<32x128xf32> to vector<128xf32>
    %4 = vector.shape_cast %3 : vector<128xf32> to vector<1x128xf32>
    %c0_4 = arith.constant 0 : index
    %c0_5 = arith.constant 0 : index
    %5 = vector.load %arg2[%c0_4, %c0_5] : memref<128x8xf32, #tpu.memory_space<vmem>>, vector<128x8xf32>
    %cst_6 = arith.constant dense<0.000000e+00> : vector<1x8xf32>
    %6 = tpu.matmul %4, %5, %cst_6 {dimension_numbers = #tpu.dot_dimension_numbers<[1], [0], [0], [1], [0, 0, 1, 1], [], []>} : vector<1x128xf32>, vector<128x8xf32>, vector<1x8xf32> -> vector<1x8xf32>
    %cst_7 = arith.constant 0.001953125 : f32
    %7 = vector.broadcast %cst_7 : f32 to vector<1x8xf32>
    %8 = arith.mulf %6, %7 : vector<1x8xf32>
    %c0_8 = arith.constant 0 : index
    %c0_9 = arith.constant 0 : index
    %9 = vector.load %arg3[%c0_8, %c0_9] : memref<8x128xf32, #tpu.memory_space<vmem>>, vector<8x128xf32>
    %cst_10 = arith.constant dense<0.000000e+00> : vector<1x128xf32>
    %10 = tpu.matmul %8, %9, %cst_10 {dimension_numbers = #tpu.dot_dimension_numbers<[1], [0], [0], [1], [0, 0, 1, 1], [], []>} : vector<1x8xf32>, vector<8x128xf32>, vector<1x128xf32> -> vector<1x128xf32>
    %11 = vector.broadcast %10 : vector<1x128xf32> to vector<32x128xf32>
    %12 = arith.subf %2, %11 : vector<32x128xf32>
    %13 = arith.mulf %12, %12 : vector<32x128xf32>
    %cst_11 = arith.constant dense<0.000000e+00> : vector<128xf32>
    %14 = vector.multi_reduction <add>, %13, %cst_11 [0] : vector<32x128xf32> to vector<128xf32>
    %15 = vector.shape_cast %14 : vector<128xf32> to vector<1x128xf32>
    %c0_12 = arith.constant 0 : index
    %c0_13 = arith.constant 0 : index
    %16 = vector.load %arg2[%c0_12, %c0_13] : memref<128x8xf32, #tpu.memory_space<vmem>>, vector<128x8xf32>
    %cst_14 = arith.constant dense<0.000000e+00> : vector<1x8xf32>
    %17 = tpu.matmul %15, %16, %cst_14 {dimension_numbers = #tpu.dot_dimension_numbers<[1], [0], [0], [1], [0, 0, 1, 1], [], []>} : vector<1x128xf32>, vector<128x8xf32>, vector<1x8xf32> -> vector<1x8xf32>
    %cst_15 = arith.constant 0.001953125 : f32
    %18 = vector.broadcast %cst_15 : f32 to vector<1x8xf32>
    %19 = arith.mulf %17, %18 : vector<1x8xf32>
    %cst_16 = arith.constant 9.99999974E-6 : f32
    %20 = vector.broadcast %cst_16 : f32 to vector<1x8xf32>
    %21 = arith.addf %19, %20 : vector<1x8xf32>
    %22 = math.rsqrt %21 : vector<1x8xf32>
    %c0_17 = arith.constant 0 : index
    %c0_18 = arith.constant 0 : index
    %23 = vector.load %arg4[%c0_17, %c0_18] : memref<1x8xf32, #tpu.memory_space<vmem>>, vector<1x8xf32>
    %24 = arith.mulf %23, %22 : vector<1x8xf32>
    %c0_19 = arith.constant 0 : index
    %c0_20 = arith.constant 0 : index
    %25 = vector.load %arg3[%c0_19, %c0_20] : memref<8x128xf32, #tpu.memory_space<vmem>>, vector<8x128xf32>
    %cst_21 = arith.constant dense<0.000000e+00> : vector<1x128xf32>
    %26 = tpu.matmul %24, %25, %cst_21 {dimension_numbers = #tpu.dot_dimension_numbers<[1], [0], [0], [1], [0, 0, 1, 1], [], []>} : vector<1x8xf32>, vector<8x128xf32>, vector<1x128xf32> -> vector<1x128xf32>
    %c0_22 = arith.constant 0 : index
    %c0_23 = arith.constant 0 : index
    %27 = vector.load %arg5[%c0_22, %c0_23] : memref<1x8xf32, #tpu.memory_space<vmem>>, vector<1x8xf32>
    %c0_24 = arith.constant 0 : index
    %c0_25 = arith.constant 0 : index
    %28 = vector.load %arg3[%c0_24, %c0_25] : memref<8x128xf32, #tpu.memory_space<vmem>>, vector<8x128xf32>
    %cst_26 = arith.constant dense<0.000000e+00> : vector<1x128xf32>
    %29 = tpu.matmul %27, %28, %cst_26 {dimension_numbers = #tpu.dot_dimension_numbers<[1], [0], [0], [1], [0, 0, 1, 1], [], []>} : vector<1x8xf32>, vector<8x128xf32>, vector<1x128xf32> -> vector<1x128xf32>
    %30 = vector.broadcast %26 : vector<1x128xf32> to vector<32x128xf32>
    %31 = arith.mulf %12, %30 : vector<32x128xf32>
    %32 = vector.broadcast %29 : vector<1x128xf32> to vector<32x128xf32>
    %33 = arith.addf %31, %32 : vector<32x128xf32>
    %cst_27 = arith.constant 0.000000e+00 : f32
    %34 = vector.broadcast %cst_27 : f32 to vector<32x128xf32>
    %35 = arith.maximumf %33, %34 : vector<32x128xf32>
    %c0_28 = arith.constant 0 : index
    %c0_29 = arith.constant 0 : index
    %36 = vector.load %arg6[%c0_28, %c0_29] : memref<32x128xf32, #tpu.memory_space<vmem>>, vector<32x128xf32>
    tpu.vector_store %arg6[%c0_28, %c0_29], %35 {strides = array<i32>} : memref<32x128xf32, #tpu.memory_space<vmem>>, vector<32x128xf32>,
    return
  }
}

</mosaic_0001>

<llo_original>
// kernel: tile.9
$region0: #{tile.9}
  %s0 = inlined_call_operand.vmem [shape: f32[16,8,8], index: 0, kind: input, shape index: {}]
  %s1 = inlined_call_operand.vmem [shape: f32[128,8], index: 1, kind: output, shape index: {}]
  %s2 = smov 3
  %v3 = vld [vmem:[%s0] ss:$16 sm:%s2]
  %s4 = smov 12
  %v5 = vld [vmem:[%s0] ss:$16 sm:%s4]
  %vm6 = vcmask 1043458
  %v7 = vsel %vm6, %v5, %v3
  %s8 = smov 48
  %v9 = vld [vmem:[%s0] ss:$16 sm:%s8]
  %vm10 = vcmask 1045508
  %v11 = vsel %vm10, %v9, %v7
  %s12 = smov 192
  %v13 = vld [vmem:[%s0] ss:$16 sm:%s12]
  %vm14 = vcmask 1047558
  %v15 = vsel %vm14, %v13, %v11
  %vm16 = vcmask 64512
  %17 = vst.msk [vmem:[%s1] sm:$0xff] %vm16, %v15
  %s18 = scalar_lea.vmem %s0, 15
  %s19 = smov 3
  %v20 = vld [vmem:[%s18] ss:$16 sm:%s19]
  %s21 = scalar_lea.vmem %s0, 15
  %s22 = smov 12
  %v23 = vld [vmem:[%s21] ss:$16 sm:%s22]
  %vm24 = vcmask 1043458
  %v25 = vsel %vm24, %v23, %v20
  %s26 = scalar_lea.vmem %s0, 15
  %s27 = smov 48
  %v28 = vld [vmem:[%s26] ss:$16 sm:%s27]
  %vm29 = vcmask 1045508
  %v30 = vsel %vm29, %v28, %v25
  %s31 = scalar_lea.vmem %s0, 15
  %s32 = smov 192
  %v33 = vld [vmem:[%s31] ss:$16 sm:%s32]
  %vm34 = vcmask 1047558
  %v35 = vsel %vm34, %v33, %v30
  %36 = vrot.lane.b32.xlu0 %v35, 120
  %v37 = vpop.permute.xlu0 %36
  %vm38 = vcmask 1048512
  %39 = vst.msk [vmem:[%s1] sm:$0xff] %vm38, %v37
  %s40 = scalar_lea.vmem %s0, 14
  %s41 = smov 3
  %v42 = vld [vmem:[%s40] ss:$16 sm:%s41]
  %s43 = scalar_lea.vmem %s0, 14
  %s44 = smov 12
  %v45 = vld [vmem:[%s43] ss:$16 sm:%s44]
  %vm46 = vcmask 1043458
  %v47 = vsel %vm46, %v45, %v42
  %s48 = scalar_lea.vmem %s0, 14
  %s49 = smov 48
  %v50 = vld [vmem:[%s48] ss:$16 sm:%s49]
  %vm51 = vcmask 1045508
  %v52 = vsel %vm51, %v50, %v47
  %s53 = scalar_lea.vmem %s0, 14
  %s54 = smov 192
  %v55 = vld [vmem:[%s53] ss:$16 sm:%s54]
  %vm56 = vcmask 1047558
  %v57 = vsel %vm56, %v55, %v52
  %58 = vrot.lane.b32.xlu0 %v57, 112
  %v59 = vpop.permute.xlu0 %58
  %vm60 = vcmask 982912
  %61 = vst.msk [vmem:[%s1] sm:$0xff] %vm60, %v59
  %s62 = scalar_lea.vmem %s0, 13
  %s63 = smov 3
  %v64 = vld [vmem:[%s62] ss:$16 sm:%s63]
  %s65 = scalar_lea.vmem %s0, 13
  %s66 = smov 12
  %v67 = vld [vmem:[%s65] ss:$16 sm:%s66]
  %vm68 = vcmask 1043458
  %v69 = vsel %vm68, %v67, %v64
  %s70 = scalar_lea.vmem %s0, 13
  %s71 = smov 48
  %v72 = vld [vmem:[%s70] ss:$16 sm:%s71]
  %vm73 = vcmask 1045508
  %v74 = vsel %vm73, %v72, %v69
  %s75 = scalar_lea.vmem %s0, 13
  %s76 = smov 192
  %v77 = vld [vmem:[%s75] ss:$16 sm:%s76]
  %vm78 = vcmask 1047558
  %v79 = vsel %vm78, %v77, %v74
  %80 = vrot.lane.b32.xlu0 %v79, 104
  %v81 = vpop.permute.xlu0 %80
  %vm82 = vcmask 917312
  %83 = vst.msk [vmem:[%s1] sm:$0xff] %vm82, %v81
  %s84 = scalar_lea.vmem %s0, 12
  %s85 = smov 3
  %v86 = vld [vmem:[%s84] ss:$16 sm:%s85]
  %s87 = scalar_lea.vmem %s0, 12
  %s88 = smov 12
  %v89 = vld [vmem:[%s87] ss:$16 sm:%s88]
  %vm90 = vcmask 1043458
  %v91 = vsel %vm90, %v89, %v86
  %s92 = scalar_lea.vmem %s0, 12
  %s93 = smov 48
  %v94 = vld [vmem:[%s92] ss:$16 sm:%s93]
  %vm95 = vcmask 1045508
  %v96 = vsel %vm95, %v94, %v91
  %s97 = scalar_lea.vmem %s0, 12
  %s98 = smov 192
  %v99 = vld [vmem:[%s97] ss:$16 sm:%s98]
  %vm100 = vcmask 1047558
  %v101 = vsel %vm100, %v99, %v96
  %102 = vrot.lane.b32.xlu0 %v101, 96
  %v103 = vpop.permute.xlu0 %102
  %vm104 = vcmask 851712
  %105 = vst.msk [vmem:[%s1] sm:$0xff] %vm104, %v103
  %s106 = scalar_lea.vmem %s0, 11
  %s107 = smov 3
  %v108 = vld [vmem:[%s106] ss:$16 sm:%s107]
  %s109 = scalar_lea.vmem %s0, 11
  %s110 = smov 12
  %v111 = vld [vmem:[%s109] ss:$16 sm:%s110]
  %vm112 = vcmask 1043458
  %v113 = vsel %vm112, %v111, %v108
  %s114 = scalar_lea.vmem %s0, 11
  %s115 = smov 48
  %v116 = vld [vmem:[%s114] ss:$16 sm:%s115]
  %vm117 = vcmask 1045508
  %v118 = vsel %vm117, %v116, %v113
  %s119 = scalar_lea.vmem %s0, 11
  %s120 = smov 192
  %v121 = vld [vmem:[%s119] ss:$16 sm:%s120]
  %vm122 = vcmask 1047558
  %v123 = vsel %vm122, %v121, %v118
  %124 = vrot.lane.b32.xlu0 %v123, 88
  %v125 = vpop.permute.xlu0 %124
  %vm126 = vcmask 786112
  %127 = vst.msk [vmem:[%s1] sm:$0xff] %vm126, %v125
  %s128 = scalar_lea.vmem %s0, 10
  %s129 = smov 3
  %v130 = vld [vmem:[%s128] ss:$16 sm:%s129]
  %s131 = scalar_lea.vmem %s0, 10
  %s132 = smov 12
  %v133 = vld [vmem:[%s131] ss:$16 sm:%s132]
  %vm134 = vcmask 1043458
  %v135 = vsel %vm134, %v133, %v130
  %s136 = scalar_lea.vmem %s0, 10
  %s137 = smov 48
  %v138 = vld [vmem:[%s136] ss:$16 sm:%s137]
  %vm139 = vcmask 1045508
  %v140 = vsel %vm139, %v138, %v135
  %s141 = scalar_lea.vmem %s0, 10
  %s142 = smov 192
  %v143 = vld [vmem:[%s141] ss:$16 sm:%s142]
  %vm144 = vcmask 1047558
  %v145 = vsel %vm144, %v143, %v140
  %146 = vrot.lane.b32.xlu0 %v145, 80
  %v147 = vpop.permute.xlu0 %146
  %vm148 = vcmask 720512
  %149 = vst.msk [vmem:[%s1] sm:$0xff] %vm148, %v147
  %s150 = scalar_lea.vmem %s0, 9
  %s151 = smov 3
  %v152 = vld [vmem:[%s150] ss:$16 sm:%s151]
  %s153 = scalar_lea.vmem %s0, 9
  %s154 = smov 12
  %v155 = vld [vmem:[%s153] ss:$16 sm:%s154]
  %vm156 = vcmask 1043458
  %v157 = vsel %vm156, %v155, %v152
  %s158 = scalar_lea.vmem %s0, 9
  %s159 = smov 48
  %v160 = vld [vmem:[%s158] ss:$16 sm:%s159]
  %vm161 = vcmask 1045508
  %v162 = vsel %vm161, %v160, %v157
  %s163 = scalar_lea.vmem %s0, 9
  %s164 = smov 192
  %v165 = vld [vmem:[%s163] ss:$16 sm:%s164]
  %vm166 = vcmask 1047558
  %v167 = vsel %vm166, %v165, %v162
  %168 = vrot.lane.b32.xlu0 %v167, 72
  %v169 = vpop.permute.xlu0 %168
  %vm170 = vcmask 654912
  %171 = vst.msk [vmem:[%s1] sm:$0xff] %vm170, %v169
  %s172 = scalar_lea.vmem %s0, 8
  %s173 = smov 3
  %v174 = vld [vmem:[%s172] ss:$16 sm:%s173]
  %s175 = scalar_lea.vmem %s0, 8
  %s176 = smov 12
  %v177 = vld [vmem:[%s175] ss:$16 sm:%s176]
  %vm178 = vcmask 1043458
  %v179 = vsel %vm178, %v177, %v174
  %s180 = scalar_lea.vmem %s0, 8
  %s181 = smov 48
  %v182 = vld [vmem:[%s180] ss:$16 sm:%s181]
  %vm183 = vcmask 1045508
  %v184 = vsel %vm183, %v182, %v179
  %s185 = scalar_lea.vmem %s0, 8
  %s186 = smov 192
  %v187 = vld [vmem:[%s185] ss:$16 sm:%s186]
  %vm188 = vcmask 1047558
  %v189 = vsel %vm188, %v187, %v184
  %190 = vrot.lane.b32.xlu0 %v189, 64
  %v191 = vpop.permute.xlu0 %190
  %vm192 = vcmask 589312
  %193 = vst.msk [vmem:[%s1] sm:$0xff] %vm192, %v191
  %s194 = scalar_lea.vmem %s0, 7
  %s195 = smov 3
  %v196 = vld [vmem:[%s194] ss:$16 sm:%s195]
  %s197 = scalar_lea.vmem %s0, 7
  %s198 = smov 12
  %v199 = vld [vmem:[%s197] ss:$16 sm:%s198]
  %vm200 = vcmask 1043458
  %v201 = vsel %vm200, %v199, %v196
  %s202 = scalar_lea.vmem %s0, 7
  %s203 = smov 48
  %v204 = vld [vmem:[%s202] ss:$16 sm:%s203]
  %vm205 = vcmask 1045508
  %v206 = vsel %vm205, %v204, %v201
  %s207 = scalar_lea.vmem %s0, 7
  %s208 = smov 192
  %v209 = vld [vmem:[%s207] ss:$16 sm:%s208]
  %vm210 = vcmask 1047558
  %v211 = vsel %vm210, %v209, %v206
  %212 = vrot.lane.b32.xlu0 %v211, 56
  %v213 = vpop.permute.xlu0 %212
  %vm214 = vcmask 523712
  %215 = vst.msk [vmem:[%s1] sm:$0xff] %vm214, %v213
  %s216 = scalar_lea.vmem %s0, 6
  %s217 = smov 3
  %v218 = vld [vmem:[%s216] ss:$16 sm:%s217]
  %s219 = scalar_lea.vmem %s0, 6
  %s220 = smov 12
  %v221 = vld [vmem:[%s219] ss:$16 sm:%s220]
  %vm222 = vcmask 1043458
  %v223 = vsel %vm222, %v221, %v218
  %s224 = scalar_lea.vmem %s0, 6
  %s225 = smov 48
  %v226 = vld [vmem:[%s224] ss:$16 sm:%s225]
  %vm227 = vcmask 1045508
  %v228 = vsel %vm227, %v226, %v223
  %s229 = scalar_lea.vmem %s0, 6
  %s230 = smov 192
  %v231 = vld [vmem:[%s229] ss:$16 sm:%s230]
  %vm232 = vcmask 1047558
  %v233 = vsel %vm232, %v231, %v228
  %234 = vrot.lane.b32.xlu0 %v233, 48
  %v235 = vpop.permute.xlu0 %234
  %vm236 = vcmask 458112
  %237 = vst.msk [vmem:[%s1] sm:$0xff] %vm236, %v235
  %s238 = scalar_lea.vmem %s0, 5
  %s239 = smov 3
  %v240 = vld [vmem:[%s238] ss:$16 sm:%s239]
  %s241 = scalar_lea.vmem %s0, 5
  %s242 = smov 12
  %v243 = vld [vmem:[%s241] ss:$16 sm:%s242]
  %vm244 = vcmask 1043458
  %v245 = vsel %vm244, %v243, %v240
  %s246 = scalar_lea.vmem %s0, 5
  %s247 = smov 48
  %v248 = vld [vmem:[%s246] ss:$16 sm:%s247]
  %vm249 = vcmask 1045508
  %v250 = vsel %vm249, %v248, %v245
  %s251 = scalar_lea.vmem %s0, 5
  %s252 = smov 192
  %v253 = vld [vmem:[%s251] ss:$16 sm:%s252]
  %vm254 = vcmask 1047558
  %v255 = vsel %vm254, %v253, %v250
  %256 = vrot.lane.b32.xlu0 %v255, 40
  %v257 = vpop.permute.xlu0 %256
  %vm258 = vcmask 392512
  %259 = vst.msk [vmem:[%s1] sm:$0xff] %vm258, %v257
  %s260 = scalar_lea.vmem %s0, 4
  %s261 = smov 3
  %v262 = vld [vmem:[%s260] ss:$16 sm:%s261]
  %s263 = scalar_lea.vmem %s0, 4
  %s264 = smov 12
  %v265 = vld [vmem:[%s263] ss:$16 sm:%s264]
  %vm266 = vcmask 1043458
  %v267 = vsel %vm266, %v265, %v262
  %s268 = scalar_lea.vmem %s0, 4
  %s269 = smov 48
  %v270 = vld [vmem:[%s268] ss:$16 sm:%s269]
  %vm271 = vcmask 1045508
  %v272 = vsel %vm271, %v270, %v267
  %s273 = scalar_lea.vmem %s0, 4
  %s274 = smov 192
  %v275 = vld [vmem:[%s273] ss:$16 sm:%s274]
  %vm276 = vcmask 1047558
  %v277 = vsel %vm276, %v275, %v272
  %278 = vrot.lane.b32.xlu0 %v277, 32
  %v279 = vpop.permute.xlu0 %278
  %vm280 = vcmask 326912
  %281 = vst.msk [vmem:[%s1] sm:$0xff] %vm280, %v279
  %s282 = scalar_lea.vmem %s0, 3
  %s283 = smov 3
  %v284 = vld [vmem:[%s282] ss:$16 sm:%s283]
  %s285 = scalar_lea.vmem %s0, 3
  %s286 = smov 12
  %v287 = vld [vmem:[%s285] ss:$16 sm:%s286]
  %vm288 = vcmask 1043458
  %v289 = vsel %vm288, %v287, %v284
  %s290 = scalar_lea.vmem %s0, 3
  %s291 = smov 48
  %v292 = vld [vmem:[%s290] ss:$16 sm:%s291]
  %vm293 = vcmask 1045508
  %v294 = vsel %vm293, %v292, %v289
  %s295 = scalar_lea.vmem %s0, 3
  %s296 = smov 192
  %v297 = vld [vmem:[%s295] ss:$16 sm:%s296]
  %vm298 = vcmask 1047558
  %v299 = vsel %vm298, %v297, %v294
  %300 = vrot.lane.b32.xlu0 %v299, 24
  %v301 = vpop.permute.xlu0 %300
  %vm302 = vcmask 261312
  %303 = vst.msk [vmem:[%s1] sm:$0xff] %vm302, %v301
  %s304 = scalar_lea.vmem %s0, 2
  %s305 = smov 3
  %v306 = vld [vmem:[%s304] ss:$16 sm:%s305]
  %s307 = scalar_lea.vmem %s0, 2
  %s308 = smov 12
  %v309 = vld [vmem:[%s307] ss:$16 sm:%s308]
  %vm310 = vcmask 1043458
  %v311 = vsel %vm310, %v309, %v306
  %s312 = scalar_lea.vmem %s0, 2
  %s313 = smov 48
  %v314 = vld [vmem:[%s312] ss:$16 sm:%s313]
  %vm315 = vcmask 1045508
  %v316 = vsel %vm315, %v314, %v311
  %s317 = scalar_lea.vmem %s0, 2
  %s318 = smov 192
  %v319 = vld [vmem:[%s317] ss:$16 sm:%s318]
  %vm320 = vcmask 1047558
  %v321 = vsel %vm320, %v319, %v316
  %322 = vrot.lane.b32.xlu0 %v321, 16
  %v323 = vpop.permute.xlu0 %322
  %vm324 = vcmask 195712
  %325 = vst.msk [vmem:[%s1] sm:$0xff] %vm324, %v323
  %s326 = scalar_lea.vmem %s0, 1
  %s327 = smov 3
  %v328 = vld [vmem:[%s326] ss:$16 sm:%s327]
  %s329 = scalar_lea.vmem %s0, 1
  %s330 = smov 12
  %v331 = vld [vmem:[%s329] ss:$16 sm:%s330]
  %vm332 = vcmask 1043458
  %v333 = vsel %vm332, %v331, %v328
  %s334 = scalar_lea.vmem %s0, 1
  %s335 = smov 48
  %v336 = vld [vmem:[%s334] ss:$16 sm:%s335]
  %vm337 = vcmask 1045508
  %v338 = vsel %vm337, %v336, %v333
  %s339 = scalar_lea.vmem %s0, 1
  %s340 = smov 192
  %v341 = vld [vmem:[%s339] ss:$16 sm:%s340]
  %vm342 = vcmask 1047558
  %v343 = vsel %vm342, %v341, %v338
  %344 = vrot.lane.b32.xlu0 %v343, 8
  %v345 = vpop.permute.xlu0 %344
  %vm346 = vcmask 130112
  %347 = vst.msk [vmem:[%s1] sm:$0xff] %vm346, %v345

// kernel: conv_block_forward.1
$region0: #{conv_block_forward.1}
  #allocation0 [shape = 'u32[]', space=smem, size = 0x4, offset = 0x4, fixed_abs, tag = 'smem constant byte address 0x4 - core index']
  #allocation1 [shape = 'u32[144,128]{1,0:T(1,128)}', space=vmem, size = 0x12000, scoped, tag = 'internal scratch']
  %s0 = inlined_call_operand.vmem [shape: bf16[32,216], index: 0, kind: input, shape index: {}]
  %s1 = inlined_call_operand.vmem [shape: bf16[216,128], index: 1, kind: input, shape index: {}]
  %s2 = inlined_call_operand.vmem [shape: f32[128,8], index: 2, kind: input, shape index: {}]
  %s3 = inlined_call_operand.vmem [shape: f32[8,128], index: 3, kind: input, shape index: {}]
  %s4 = inlined_call_operand.vmem [shape: f32[1,8], index: 4, kind: input, shape index: {}]
  %s5 = inlined_call_operand.vmem [shape: f32[1,8], index: 5, kind: input, shape index: {}]
  %s6 = inlined_call_operand.vmem [shape: f32[32,128], index: 6, kind: output, shape index: {}]
  %s7 = sld [smem:[#allocation0]]
  $region34: #{conv_block_forward.1} parent=0
    _
  %s9 = ssub.s32 1, %s7
  %s10 = scalar_select 0, %s9, %s7
  // Predicated region
  $region2: #{conv_block_forward.1} parent=0 // pred_check
    _
  $region3: #{conv_block_forward.1} parent=0 // pred_check_branch
    %12 = sbr.rel (0) target = $region5
  $region4: #{conv_block_forward.1} parent=0 // pred_region
    _
  $region5: #{conv_block_forward.1} parent=0 // pred_fallthru
    _
  // Predicated region
  $region6: #{conv_block_forward.1} parent=0 // pred_check
    _
  $region7: #{conv_block_forward.1} parent=0 // pred_check_branch
    %14 = sbr.rel (0) target = $region9
  $region8: #{conv_block_forward.1} parent=0 // pred_region
    _
  $region9: #{conv_block_forward.1} parent=0 // pred_fallthru
    _
  // Predicated region
  $region10: #{conv_block_forward.1} parent=0 // pred_check
    _
  $region11: #{conv_block_forward.1} parent=0 // pred_check_branch
    %16 = sbr.rel (0) target = $region13
  $region12: #{conv_block_forward.1} parent=0 // pred_region
    _
  $region13: #{conv_block_forward.1} parent=0 // pred_fallthru
    _
  // Predicated region
  $region14: #{conv_block_forward.1} parent=0 // pred_check
    _
  $region15: #{conv_block_forward.1} parent=0 // pred_check_branch
    %18 = sbr.rel (0) target = $region17
  $region16: #{conv_block_forward.1} parent=0 // pred_region
    _
  $region17: #{conv_block_forward.1} parent=0 // pred_fallthru
    _
  // Predicated region
  $region18: #{conv_block_forward.1} parent=0 // pred_check
    _
  $region19: #{conv_block_forward.1} parent=0 // pred_check_branch
    %20 = sbr.rel (0) target = $region21
  $region20: #{conv_block_forward.1} parent=0 // pred_region
    _
  $region21: #{conv_block_forward.1} parent=0 // pred_fallthru
    _
  // Predicated region
  $region22: #{conv_block_forward.1} parent=0 // pred_check
    _
  $region23: #{conv_block_forward.1} parent=0 // pred_check_branch
    %22 = sbr.rel (0) target = $region25
  $region24: #{conv_block_forward.1} parent=0 // pred_region
    _
  $region25: #{conv_block_forward.1} parent=0 // pred_fallthru
    _
  %v24 = vld [vmem:[%s0] sm:$0xff]
  %v25 = vld [vmem:[%s0 + $0x8] sm:$0xff]
  %v26 = vld [vmem:[%s0 + $0x10] sm:$0xff]
  %v27 = vld [vmem:[%s0 + $0x18] sm:$0xff]
  %v28 = vld [vmem:[%s1] sm:$0xf]
  %v29 = vld [vmem:[%s1 + $0x4] sm:$0xf]
  %v30 = vld [vmem:[%s1 + $0x8] sm:$0xf]
  %v31 = vld [vmem:[%s1 + $0xc] sm:$0xf]
  %v32 = vld [vmem:[%s1 + $0x10] sm:$0xf]
  %v33 = vld [vmem:[%s1 + $0x14] sm:$0xf]
  %v34 = vld [vmem:[%s1 + $0x18] sm:$0xf]
  %v35 = vld [vmem:[%s1 + $0x1c] sm:$0xf]
  %v36 = vld [vmem:[%s1 + $0x20] sm:$0xf]
  %v37 = vld [vmem:[%s1 + $0x24] sm:$0xf]
  %v38 = vld [vmem:[%s1 + $0x28] sm:$0xf]
  %v39 = vld [vmem:[%s1 + $0x2c] sm:$0xf]
  %v40 = vld [vmem:[%s1 + $0x30] sm:$0xf]
  %v41 = vld [vmem:[%s1 + $0x34] sm:$0xf]
  %v42 = vld [vmem:[%s1 + $0x38] sm:$0xf]
  %v43 = vld [vmem:[%s1 + $0x3c] sm:$0xf]
  %v44 = vld [vmem:[%s1 + $0x40] sm:$0xf]
  %v45 = vld [vmem:[%s1 + $0x44] sm:$0xf]
  %v46 = vld [vmem:[%s1 + $0x48] sm:$0xf]
  %v47 = vld [vmem:[%s1 + $0x4c] sm:$0xf]
  %v48 = vld [vmem:[%s1 + $0x50] sm:$0xf]
  %v49 = vld [vmem:[%s1 + $0x54] sm:$0xf]
  %v50 = vld [vmem:[%s1 + $0x58] sm:$0xf]
  %v51 = vld [vmem:[%s1 + $0x5c] sm:$0xf]
  %v52 = vld [vmem:[%s1 + $0x60] sm:$0xf]
  %v53 = vld [vmem:[%s1 + $0x64] sm:$0xf]
  %v54 = vld [vmem:[%s1 + $0x68] sm:$0xf]
  %v59 = vunpack.c.l.b16 %v24
  %v60 = vunpack.c.h.b16 %v24
  %v61 = vunpack.c.l.b16 %v25
  %v62 = vunpack.c.h.b16 %v25
  %v63 = vunpack.c.l.b16 %v26
  %v64 = vunpack.c.h.b16 %v26
  %v65 = vunpack.c.l.b16 %v27
  %v66 = vunpack.c.h.b16 %v27
  %v67 = vpack.c.b16 %v61, %v59
  %v68 = vpack.c.b16 %v62, %v60
  %v69 = vpack.c.b16 %v65, %v63
  %v70 = vpack.c.b16 %v66, %v64
  %v100 = vunpack.c.l.b16 %v28
  %v101 = vunpack.c.l.b16 %v29
  %v102 = vunpack.c.l.b16 %v30
  %v103 = vunpack.c.l.b16 %v31
  %v104 = vunpack.c.l.b16 %v32
  %v105 = vunpack.c.l.b16 %v33
  %v106 = vunpack.c.l.b16 %v34
  %v107 = vunpack.c.l.b16 %v35
  %v108 = vunpack.c.l.b16 %v36
  %v109 = vunpack.c.l.b16 %v37
  %v110 = vunpack.c.l.b16 %v38
  %v111 = vunpack.c.l.b16 %v39
  %v112 = vunpack.c.l.b16 %v40
  %v113 = vunpack.c.l.b16 %v41
  %v114 = vunpack.c.l.b16 %v42
  %v115 = vunpack.c.l.b16 %v43
  %v116 = vunpack.c.l.b16 %v44
  %v117 = vunpack.c.l.b16 %v45
  %v118 = vunpack.c.l.b16 %v46
  %v119 = vunpack.c.l.b16 %v47
  %v120 = vunpack.c.l.b16 %v48
  %v121 = vunpack.c.l.b16 %v49
  %v122 = vunpack.c.l.b16 %v50
  %v123 = vunpack.c.l.b16 %v51
  %v124 = vunpack.c.l.b16 %v52
  %v125 = vunpack.c.l.b16 %v53
  %v126 = vunpack.c.l.b16 %v54
  %v127 = vpack.c.b16 %v101, %v100
  %v128 = vpack.c.b16 %v103, %v102
  %v129 = vpack.c.b16 %v105, %v104
  %v130 = vpack.c.b16 %v107, %v106
  %v131 = vpack.c.b16 %v109, %v108
  %v132 = vpack.c.b16 %v111, %v110
  %v133 = vpack.c.b16 %v113, %v112
  %v134 = vpack.c.b16 %v115, %v114
  %v135 = vpack.c.b16 %v117, %v116
  %v136 = vpack.c.b16 %v119, %v118
  %v137 = vpack.c.b16 %v121, %v120
  %v138 = vpack.c.b16 %v123, %v122
  %v139 = vpack.c.b16 %v125, %v124
  %v140 = vpack.c.b16 %v126, %v126
  %vm154 = vcmask 719872
  %v156 = vsel %vm154, %v68, 0
  %v159 = vsel %vm154, %v70, 0
  %vm161 = vcmask 1043456
  %v163 = vsel %vm161, %v140, 0
  %165 = vmatprep.subr.bf16.mxu0 0
  %166 = vmatpush1.bf16.msra.mxu0 %v127
  %167 = vmatprep.subr.bf16.mxu0 0
  %168 = vmatpush1.bf16.msra.mxu0 %v128
  %169 = vmatprep.subr.bf16.mxu0 0
  %170 = vmatpush1.bf16.msra.mxu0 %v129
  %171 = vmatprep.subr.bf16.mxu0 0
  %172 = vmatpush1.bf16.msra.mxu0 %v130
  %173 = vmatprep.subr.bf16.mxu0 0
  %174 = vmatpush1.bf16.msra.mxu0 %v131
  %175 = vmatprep.subr.bf16.mxu0 0
  %176 = vmatpush1.bf16.msra.mxu0 %v132
  %177 = vmatprep.subr.bf16.mxu0 0
  %178 = vmatpush1.bf16.msra.mxu0 %v133
  %179 = vmatprep.subr.bf16.mxu0 0
  %180 = vmatpush1.bf16.msra.mxu0 %v134
  %181 = vmatprep.subr.bf16.mxu0 0
  %182 = vmatpush1.bf16.msra.mxu0 %v135
  %183 = vmatprep.subr.bf16.mxu0 0
  %184 = vmatpush1.bf16.msra.mxu0 %v136
  %185 = vmatprep.subr.bf16.mxu0 0
  %186 = vmatpush1.bf16.msra.mxu0 %v137
  %187 = vmatprep.subr.bf16.mxu0 0
  %188 = vmatpush1.bf16.msra.mxu0 %v138
  %189 = vmatprep.subr.bf16.mxu0 0
  %190 = vmatpush1.bf16.msra.mxu0 %v139
  %191 = vmatprep.subr.bf16.mxu0 0
  %192 = vmatpush1.bf16.msra.mxu0 %v163
  %193 = vmatprep.subr.bf16.mxu0 0
  %194 = vmatpush1.bf16.msra.mxu0 0
  %195 = vmatprep.subr.bf16.mxu0 0
  %196 = vmatpush1.bf16.msra.mxu0 0
  %197 = vmatprep.mubr.bf16.mxu0 %v156
  %198 = vmatmul.mubr.bf16.gmra.mrb[0].mxu0 %v67
  %v199 = vpop.f32.mrb[0].mxu0
  %v200 = vadd.f32 0.0, %v199
  %v201 = vpop.f32.mrb[0].mxu0
  %v202 = vpop.f32.mrb[0].mxu0
  %v203 = vadd.f32 0.0, %v202
  %v204 = vpop.f32.mrb[0].mxu0
  %205 = vmatprep.mubr.bf16.mxu0 %v159
  %206 = vmatmul.mubr.bf16.gmra.mrb[0].mxu0 %v69
  %v207 = vpop.f32.mrb[0].mxu0
  %v208 = vadd.f32 0.0, %v207
  %v209 = vpop.f32.mrb[0].mxu0
  %v210 = vpop.f32.mrb[0].mxu0
  %v211 = vadd.f32 0.0, %v210
  %v212 = vpop.f32.mrb[0].mxu0
  %213 = vdwg.mxu0
  %v214 = vadd.f32 %v200, %v203
  %v215 = vadd.f32 %v214, %v208
  %v216 = vadd.f32 %v215, %v211
  %v217 = vrot.slane %v216, 4
  %v218 = vadd.f32 %v216, %v217
  %v219 = vrot.slane %v218, 2
  %v220 = vadd.f32 %v218, %v219
  %v221 = vrot.slane %v220, 1
  %v222 = vadd.f32 %v220, %v221
  %v223 = vld [vmem:[%s2] sm:$0xff]
  %v224 = vld [vmem:[%s2 + $0x8] sm:$0xff]
  %v225 = vld [vmem:[%s2 + $0x10] sm:$0xff]
  %v226 = vld [vmem:[%s2 + $0x18] sm:$0xff]
  %v227 = vld [vmem:[%s2 + $0x20] sm:$0xff]
  %v228 = vld [vmem:[%s2 + $0x28] sm:$0xff]
  %v229 = vld [vmem:[%s2 + $0x30] sm:$0xff]
  %v230 = vld [vmem:[%s2 + $0x38] sm:$0xff]
  %v231 = vld [vmem:[%s2 + $0x40] sm:$0xff]
  %v232 = vld [vmem:[%s2 + $0x48] sm:$0xff]
  %v233 = vld [vmem:[%s2 + $0x50] sm:$0xff]
  %v234 = vld [vmem:[%s2 + $0x58] sm:$0xff]
  %v235 = vld [vmem:[%s2 + $0x60] sm:$0xff]
  %v236 = vld [vmem:[%s2 + $0x68] sm:$0xff]
  %v237 = vld [vmem:[%s2 + $0x70] sm:$0xff]
  %v238 = vld [vmem:[%s2 + $0x78] sm:$0xff]
  %239 = vmatprep.subr.mxu0 0.0
  %240 = vmatpush1.msra.mxu0 %v223
  %241 = vmatprep.subr.mxu0 0.0
  %242 = vmatpush1.msra.mxu0 %v224
  %243 = vmatprep.subr.mxu0 0.0
  %244 = vmatpush1.msra.mxu0 %v225
  %245 = vmatprep.subr.mxu0 0.0
  %246 = vmatpush1.msra.mxu0 %v226
  %247 = vmatprep.subr.mxu0 0.0
  %248 = vmatpush1.msra.mxu0 %v227
  %249 = vmatprep.subr.mxu0 0.0
  %250 = vmatpush1.msra.mxu0 %v228
  %251 = vmatprep.subr.mxu0 0.0
  %252 = vmatpush1.msra.mxu0 %v229
  %253 = vmatprep.subr.mxu0 0.0
  %254 = vmatpush1.msra.mxu0 %v230
  %255 = vmatprep.subr.mxu0 0.0
  %256 = vmatpush1.msra.mxu0 %v231
  %257 = vmatprep.subr.mxu0 0.0
  %258 = vmatpush1.msra.mxu0 %v232
  %259 = vmatprep.subr.mxu0 0.0
  %260 = vmatpush1.msra.mxu0 %v233
  %261 = vmatprep.subr.mxu0 0.0
  %262 = vmatpush1.msra.mxu0 %v234
  %263 = vmatprep.subr.mxu0 0.0
  %264 = vmatpush1.msra.mxu0 %v235
  %265 = vmatprep.subr.mxu0 0.0
  %266 = vmatpush1.msra.mxu0 %v236
  %267 = vmatprep.subr.mxu0 0.0
  %268 = vmatpush1.msra.mxu0 %v237
  %269 = vmatprep.subr.mxu0 0.0
  %270 = vmatpush1.msra.mxu0 %v238
  %271 = vmatprep.subr.mxu0 0.0
  %272 = vmatpush1.msra.mxu0 0.0
  %273 = vmatprep.subr.mxu0 0.0
  %274 = vmatpush1.msra.mxu0 0.0
  %275 = vmatprep.subr.mxu0 0.0
  %276 = vmatpush1.msra.mxu0 0.0
  %277 = vmatprep.subr.mxu0 0.0
  %278 = vmatpush1.msra.mxu0 0.0
  %279 = vmatprep.subr.mxu0 0.0
  %280 = vmatpush1.msra.mxu0 0.0
  %281 = vmatprep.subr.mxu0 0.0
  %282 = vmatpush1.msra.mxu0 0.0
  %283 = vmatprep.subr.mxu0 0.0
  %284 = vmatpush1.msra.mxu0 0.0
  %285 = vmatprep.subr.mxu0 0.0
  %286 = vmatpush1.msra.mxu0 0.0
  %287 = vmatprep.subr.mxu0 0.0
  %288 = vmatpush1.msra.mxu0 0.0
  %289 = vmatprep.subr.mxu0 0.0
  %290 = vmatpush1.msra.mxu0 0.0
  %291 = vmatprep.subr.mxu0 0.0
  %292 = vmatpush1.msra.mxu0 0.0
  %293 = vmatprep.subr.mxu0 0.0
  %294 = vmatpush1.msra.mxu0 0.0
  %295 = vmatprep.subr.mxu0 0.0
  %296 = vmatpush1.msra.mxu0 0.0
  %297 = vmatprep.subr.mxu0 0.0
  %298 = vmatpush1.msra.mxu0 0.0
  %299 = vmatprep.subr.mxu0 0.0
  %300 = vmatpush1.msra.mxu0 0.0
  %301 = vmatprep.subr.mxu0 0.0
  %302 = vmatpush1.msra.mxu0 0.0
  %303 = vmatprep.mubr.f32.mxu0 0.0
  %304 = vmatmul.mubr.f32.gmra.mrb[0].mxu0 %v222
  %v305 = vpop.f32.mrb[0].mxu0
  %v306 = vadd.f32 0.0, %v305
  %v307 = vpop.f32.mrb[0].mxu0
  %308 = vdwg.mxu0
  %v309 = vmul.f32 %v306, 0.001953125
  %v310 = vld [vmem:[%s3] sm:$0xff]
  %vm311 = vcmask 64512
  %v313 = vsel %vm311, %v309, 0
  %315 = vmatprep.subr.mxu0 0.0
  %316 = vmatpush1.msra.mxu0 %v310
  %317 = vmatprep.subr.mxu0 0.0
  %318 = vmatpush1.msra.mxu0 0.0
  %319 = vmatprep.subr.mxu0 0.0
  %320 = vmatpush1.msra.mxu0 0.0
  %321 = vmatprep.subr.mxu0 0.0
  %322 = vmatpush1.msra.mxu0 0.0
  %323 = vmatprep.subr.mxu0 0.0
  %324 = vmatpush1.msra.mxu0 0.0
  %325 = vmatprep.subr.mxu0 0.0
  %326 = vmatpush1.msra.mxu0 0.0
  %327 = vmatprep.subr.mxu0 0.0
  %328 = vmatpush1.msra.mxu0 0.0
  %329 = vmatprep.subr.mxu0 0.0
  %330 = vmatpush1.msra.mxu0 0.0
  %331 = vmatprep.subr.mxu0 0.0
  %332 = vmatpush1.msra.mxu0 0.0
  %333 = vmatprep.subr.mxu0 0.0
  %334 = vmatpush1.msra.mxu0 0.0
  %335 = vmatprep.subr.mxu0 0.0
  %336 = vmatpush1.msra.mxu0 0.0
  %337 = vmatprep.subr.mxu0 0.0
  %338 = vmatpush1.msra.mxu0 0.0
  %339 = vmatprep.subr.mxu0 0.0
  %340 = vmatpush1.msra.mxu0 0.0
  %341 = vmatprep.subr.mxu0 0.0
  %342 = vmatpush1.msra.mxu0 0.0
  %343 = vmatprep.subr.mxu0 0.0
  %344 = vmatpush1.msra.mxu0 0.0
  %345 = vmatprep.subr.mxu0 0.0
  %346 = vmatpush1.msra.mxu0 0.0
  %347 = vmatprep.subr.mxu0 0.0
  %348 = vmatpush1.msra.mxu0 0.0
  %349 = vmatprep.subr.mxu0 0.0
  %350 = vmatpush1.msra.mxu0 0.0
  %351 = vmatprep.subr.mxu0 0.0
  %352 = vmatpush1.msra.mxu0 0.0
  %353 = vmatprep.subr.mxu0 0.0
  %354 = vmatpush1.msra.mxu0 0.0
  %355 = vmatprep.subr.mxu0 0.0
  %356 = vmatpush1.msra.mxu0 0.0
  %357 = vmatprep.subr.mxu0 0.0
  %358 = vmatpush1.msra.mxu0 0.0
  %359 = vmatprep.subr.mxu0 0.0
  %360 = vmatpush1.msra.mxu0 0.0
  %361 = vmatprep.subr.mxu0 0.0
  %362 = vmatpush1.msra.mxu0 0.0
  %363 = vmatprep.subr.mxu0 0.0
  %364 = vmatpush1.msra.mxu0 0.0
  %365 = vmatprep.subr.mxu0 0.0
  %366 = vmatpush1.msra.mxu0 0.0
  %367 = vmatprep.subr.mxu0 0.0
  %368 = vmatpush1.msra.mxu0 0.0
  %369 = vmatprep.subr.mxu0 0.0
  %370 = vmatpush1.msra.mxu0 0.0
  %371 = vmatprep.subr.mxu0 0.0
  %372 = vmatpush1.msra.mxu0 0.0
  %373 = vmatprep.subr.mxu0 0.0
  %374 = vmatpush1.msra.mxu0 0.0
  %375 = vmatprep.subr.mxu0 0.0
  %376 = vmatpush1.msra.mxu0 0.0
  %377 = vmatprep.subr.mxu0 0.0
  %378 = vmatpush1.msra.mxu0 0.0
  %379 = vmatprep.mubr.f32.mxu0 0.0
  %380 = vmatmul.mubr.f32.gmra.mrb[0].mxu0 %v313
  %v381 = vpop.f32.mrb[0].mxu0
  %v382 = vadd.f32 0.0, %v381
  %v383 = vpop.f32.mrb[0].mxu0
  %384 = vdwg.mxu0
  %v385 = vlaneseq
  %v386 = vshrl.u32 %v385, 7
  %v387 = vsub.s32 0, %v386
  %v388 = vrot.slane %v382, %v387
  %v389 = vsub.f32 %v200, %v388
  %v390 = vsub.f32 %v203, %v388
  %v391 = vsub.f32 %v208, %v388
  %v392 = vsub.f32 %v211, %v388
  %v393 = vmul.f32 %v389, %v389
  %v394 = vmul.f32 %v390, %v390
  %v395 = vmul.f32 %v391, %v391
  %v396 = vmul.f32 %v392, %v392
  %v397 = vadd.f32 %v393, %v394
  %v398 = vadd.f32 %v397, %v395
  %v399 = vadd.f32 %v398, %v396
  %v400 = vrot.slane %v399, 4
  %v401 = vadd.f32 %v399, %v400
  %v402 = vrot.slane %v401, 2
  %v403 = vadd.f32 %v401, %v402
  %v404 = vrot.slane %v403, 1
  %v405 = vadd.f32 %v403, %v404
  %406 = vmatprep.subr.mxu0 0.0
  %407 = vmatpush1.msra.mxu0 %v223
  %408 = vmatprep.subr.mxu0 0.0
  %409 = vmatpush1.msra.mxu0 %v224
  %410 = vmatprep.subr.mxu0 0.0
  %411 = vmatpush1.msra.mxu0 %v225
  %412 = vmatprep.subr.mxu0 0.0
  %413 = vmatpush1.msra.mxu0 %v226
  %414 = vmatprep.subr.mxu0 0.0
  %415 = vmatpush1.msra.mxu0 %v227
  %416 = vmatprep.subr.mxu0 0.0
  %417 = vmatpush1.msra.mxu0 %v228
  %418 = vmatprep.subr.mxu0 0.0
  %419 = vmatpush1.msra.mxu0 %v229
  %420 = vmatprep.subr.mxu0 0.0
  %421 = vmatpush1.msra.mxu0 %v230
  %422 = vmatprep.subr.mxu0 0.0
  %423 = vmatpush1.msra.mxu0 %v231
  %424 = vmatprep.subr.mxu0 0.0
  %425 = vmatpush1.msra.mxu0 %v232
  %426 = vmatprep.subr.mxu0 0.0
  %427 = vmatpush1.msra.mxu0 %v233
  %428 = vmatprep.subr.mxu0 0.0
  %429 = vmatpush1.msra.mxu0 %v234
  %430 = vmatprep.subr.mxu0 0.0
  %431 = vmatpush1.msra.mxu0 %v235
  %432 = vmatprep.subr.mxu0 0.0
  %433 = vmatpush1.msra.mxu0 %v236
  %434 = vmatprep.subr.mxu0 0.0
  %435 = vmatpush1.msra.mxu0 %v237
  %436 = vmatprep.subr.mxu0 0.0
  %437 = vmatpush1.msra.mxu0 %v238
  %438 = vmatprep.subr.mxu0 0.0
  %439 = vmatpush1.msra.mxu0 0.0
  %440 = vmatprep.subr.mxu0 0.0
  %441 = vmatpush1.msra.mxu0 0.0
  %442 = vmatprep.subr.mxu0 0.0
  %443 = vmatpush1.msra.mxu0 0.0
  %444 = vmatprep.subr.mxu0 0.0
  %445 = vmatpush1.msra.mxu0 0.0
  %446 = vmatprep.subr.mxu0 0.0
  %447 = vmatpush1.msra.mxu0 0.0
  %448 = vmatprep.subr.mxu0 0.0
  %449 = vmatpush1.msra.mxu0 0.0
  %450 = vmatprep.subr.mxu0 0.0
  %451 = vmatpush1.msra.mxu0 0.0
  %452 = vmatprep.subr.mxu0 0.0
  %453 = vmatpush1.msra.mxu0 0.0
  %454 = vmatprep.subr.mxu0 0.0
  %455 = vmatpush1.msra.mxu0 0.0
  %456 = vmatprep.subr.mxu0 0.0
  %457 = vmatpush1.msra.mxu0 0.0
  %458 = vmatprep.subr.mxu0 0.0
  %459 = vmatpush1.msra.mxu0 0.0
  %460 = vmatprep.subr.mxu0 0.0
  %461 = vmatpush1.msra.mxu0 0.0
  %462 = vmatprep.subr.mxu0 0.0
  %463 = vmatpush1.msra.mxu0 0.0
  %464 = vmatprep.subr.mxu0 0.0
  %465 = vmatpush1.msra.mxu0 0.0
  %466 = vmatprep.subr.mxu0 0.0
  %467 = vmatpush1.msra.mxu0 0.0
  %468 = vmatprep.subr.mxu0 0.0
  %469 = vmatpush1.msra.mxu0 0.0
  %470 = vmatprep.mubr.f32.mxu0 0.0
  %471 = vmatmul.mubr.f32.gmra.mrb[0].mxu0 %v405
  %v472 = vpop.f32.mrb[0].mxu0
  %v473 = vadd.f32 0.0, %v472
  %v474 = vpop.f32.mrb[0].mxu0
  %475 = vdwg.mxu0
  %v476 = vmul.f32 %v473, 0.001953125
  %v477 = vadd.f32 %v476, 1e-05
  %v478 = vrsqrt.pop %v477
  %v479 = vld [vmem:[%s4] sm:$0x1]
  %v480 = vmul.f32 %v479, %v478
  %v482 = vsel %vm311, %v480, 0
  %484 = vmatprep.subr.mxu0 0.0
  %485 = vmatpush1.msra.mxu0 %v310
  %486 = vmatprep.subr.mxu0 0.0
  %487 = vmatpush1.msra.mxu0 0.0
  %488 = vmatprep.subr.mxu0 0.0
  %489 = vmatpush1.msra.mxu0 0.0
  %490 = vmatprep.subr.mxu0 0.0
  %491 = vmatpush1.msra.mxu0 0.0
  %492 = vmatprep.subr.mxu0 0.0
  %493 = vmatpush1.msra.mxu0 0.0
  %494 = vmatprep.subr.mxu0 0.0
  %495 = vmatpush1.msra.mxu0 0.0
  %496 = vmatprep.subr.mxu0 0.0
  %497 = vmatpush1.msra.mxu0 0.0
  %498 = vmatprep.subr.mxu0 0.0
  %499 = vmatpush1.msra.mxu0 0.0
  %500 = vmatprep.subr.mxu0 0.0
  %501 = vmatpush1.msra.mxu0 0.0
  %502 = vmatprep.subr.mxu0 0.0
  %503 = vmatpush1.msra.mxu0 0.0
  %504 = vmatprep.subr.mxu0 0.0
  %505 = vmatpush1.msra.mxu0 0.0
  %506 = vmatprep.subr.mxu0 0.0
  %507 = vmatpush1.msra.mxu0 0.0
  %508 = vmatprep.subr.mxu0 0.0
  %509 = vmatpush1.msra.mxu0 0.0
  %510 = vmatprep.subr.mxu0 0.0
  %511 = vmatpush1.msra.mxu0 0.0
  %512 = vmatprep.subr.mxu0 0.0
  %513 = vmatpush1.msra.mxu0 0.0
  %514 = vmatprep.subr.mxu0 0.0
  %515 = vmatpush1.msra.mxu0 0.0
  %516 = vmatprep.subr.mxu0 0.0
  %517 = vmatpush1.msra.mxu0 0.0
  %518 = vmatprep.subr.mxu0 0.0
  %519 = vmatpush1.msra.mxu0 0.0
  %520 = vmatprep.subr.mxu0 0.0
  %521 = vmatpush1.msra.mxu0 0.0
  %522 = vmatprep.subr.mxu0 0.0
  %523 = vmatpush1.msra.mxu0 0.0
  %524 = vmatprep.subr.mxu0 0.0
  %525 = vmatpush1.msra.mxu0 0.0
  %526 = vmatprep.subr.mxu0 0.0
  %527 = vmatpush1.msra.mxu0 0.0
  %528 = vmatprep.subr.mxu0 0.0
  %529 = vmatpush1.msra.mxu0 0.0
  %530 = vmatprep.subr.mxu0 0.0
  %531 = vmatpush1.msra.mxu0 0.0
  %532 = vmatprep.subr.mxu0 0.0
  %533 = vmatpush1.msra.mxu0 0.0
  %534 = vmatprep.subr.mxu0 0.0
  %535 = vmatpush1.msra.mxu0 0.0
  %536 = vmatprep.subr.mxu0 0.0
  %537 = vmatpush1.msra.mxu0 0.0
  %538 = vmatprep.subr.mxu0 0.0
  %539 = vmatpush1.msra.mxu0 0.0
  %540 = vmatprep.subr.mxu0 0.0
  %541 = vmatpush1.msra.mxu0 0.0
  %542 = vmatprep.subr.mxu0 0.0
  %543 = vmatpush1.msra.mxu0 0.0
  %544 = vmatprep.subr.mxu0 0.0
  %545 = vmatpush1.msra.mxu0 0.0
  %546 = vmatprep.subr.mxu0 0.0
  %547 = vmatpush1.msra.mxu0 0.0
  %548 = vmatprep.mubr.f32.mxu0 0.0
  %549 = vmatmul.mubr.f32.gmra.mrb[0].mxu0 %v482
  %v550 = vpop.f32.mrb[0].mxu0
  %v551 = vadd.f32 0.0, %v550
  %v552 = vpop.f32.mrb[0].mxu0
  %553 = vdwg.mxu0
  %v554 = vld [vmem:[%s5] sm:$0x1]
  %v556 = vsel %vm311, %v554, 0
  %558 = vmatprep.subr.mxu0 0.0
  %559 = vmatpush1.msra.mxu0 %v310
  %560 = vmatprep.subr.mxu0 0.0
  %561 = vmatpush1.msra.mxu0 0.0
  %562 = vmatprep.subr.mxu0 0.0
  %563 = vmatpush1.msra.mxu0 0.0
  %564 = vmatprep.subr.mxu0 0.0
  %565 = vmatpush1.msra.mxu0 0.0
  %566 = vmatprep.subr.mxu0 0.0
  %567 = vmatpush1.msra.mxu0 0.0
  %568 = vmatprep.subr.mxu0 0.0
  %569 = vmatpush1.msra.mxu0 0.0
  %570 = vmatprep.subr.mxu0 0.0
  %571 = vmatpush1.msra.mxu0 0.0
  %572 = vmatprep.subr.mxu0 0.0
  %573 = vmatpush1.msra.mxu0 0.0
  %574 = vmatprep.subr.mxu0 0.0
  %575 = vmatpush1.msra.mxu0 0.0
  %576 = vmatprep.subr.mxu0 0.0
  %577 = vmatpush1.msra.mxu0 0.0
  %578 = vmatprep.subr.mxu0 0.0
  %579 = vmatpush1.msra.mxu0 0.0
  %580 = vmatprep.subr.mxu0 0.0
  %581 = vmatpush1.msra.mxu0 0.0
  %582 = vmatprep.subr.mxu0 0.0
  %583 = vmatpush1.msra.mxu0 0.0
  %584 = vmatprep.subr.mxu0 0.0
  %585 = vmatpush1.msra.mxu0 0.0
  %586 = vmatprep.subr.mxu0 0.0
  %587 = vmatpush1.msra.mxu0 0.0
  %588 = vmatprep.subr.mxu0 0.0
  %589 = vmatpush1.msra.mxu0 0.0
  %590 = vmatprep.subr.mxu0 0.0
  %591 = vmatpush1.msra.mxu0 0.0
  %592 = vmatprep.subr.mxu0 0.0
  %593 = vmatpush1.msra.mxu0 0.0
  %594 = vmatprep.subr.mxu0 0.0
  %595 = vmatpush1.msra.mxu0 0.0
  %596 = vmatprep.subr.mxu0 0.0
  %597 = vmatpush1.msra.mxu0 0.0
  %598 = vmatprep.subr.mxu0 0.0
  %599 = vmatpush1.msra.mxu0 0.0
  %600 = vmatprep.subr.mxu0 0.0
  %601 = vmatpush1.msra.mxu0 0.0
  %602 = vmatprep.subr.mxu0 0.0
  %603 = vmatpush1.msra.mxu0 0.0
  %604 = vmatprep.subr.mxu0 0.0
  %605 = vmatpush1.msra.mxu0 0.0
  %606 = vmatprep.subr.mxu0 0.0
  %607 = vmatpush1.msra.mxu0 0.0
  %608 = vmatprep.subr.mxu0 0.0
  %609 = vmatpush1.msra.mxu0 0.0
  %610 = vmatprep.subr.mxu0 0.0
  %611 = vmatpush1.msra.mxu0 0.0
  %612 = vmatprep.subr.mxu0 0.0
  %613 = vmatpush1.msra.mxu0 0.0
  %614 = vmatprep.subr.mxu0 0.0
  %615 = vmatpush1.msra.mxu0 0.0
  %616 = vmatprep.subr.mxu0 0.0
  %617 = vmatpush1.msra.mxu0 0.0
  %618 = vmatprep.subr.mxu0 0.0
  %619 = vmatpush1.msra.mxu0 0.0
  %620 = vmatprep.subr.mxu0 0.0
  %621 = vmatpush1.msra.mxu0 0.0
  %622 = vmatprep.mubr.f32.mxu0 0.0
  %623 = vmatmul.mubr.f32.gmra.mrb[0].mxu0 %v556
  %v624 = vpop.f32.mrb[0].mxu0
  %v625 = vadd.f32 0.0, %v624
  %v626 = vpop.f32.mrb[0].mxu0
  %627 = vdwg.mxu0
  %v628 = vlaneseq
  %v629 = vshrl.u32 %v628, 7
  %v630 = vsub.s32 0, %v629
  %v631 = vrot.slane %v551, %v630
  %v632 = vmul.f32 %v389, %v631
  %v633 = vmul.f32 %v390, %v631
  %v634 = vmul.f32 %v391, %v631
  %v635 = vmul.f32 %v392, %v631
  %v636 = vlaneseq
  %v637 = vshrl.u32 %v636, 7
  %v638 = vsub.s32 0, %v637
  %v639 = vrot.slane %v625, %v638
  %v640 = vadd.f32 %v632, %v639
  %v641 = vadd.f32 %v633, %v639
  %v642 = vadd.f32 %v634, %v639
  %v643 = vadd.f32 %v635, %v639
  %v644 = vmax.f32 %v640, 0.0
  %v645 = vmax.f32 %v641, 0.0
  %v646 = vmax.f32 %v642, 0.0
  %v647 = vmax.f32 %v643, 0.0
  %648 = vst [vmem:[%s6] sm:$0xff] %v644
  %649 = vst [vmem:[%s6 + $0x8] sm:$0xff] %v645
  %650 = vst [vmem:[%s6 + $0x10] sm:$0xff] %v646
  %651 = vst [vmem:[%s6 + $0x18] sm:$0xff] %v647
  // Predicated region
  $region26: #{conv_block_forward.1} parent=0 // pred_check
    _
  $region27: #{conv_block_forward.1} parent=0 // pred_check_branch
    %653 = sbr.rel (0) target = $region29
  $region28: #{conv_block_forward.1} parent=0 // pred_region
    _
  $region29: #{conv_block_forward.1} parent=0 // pred_fallthru
    _
  // Predicated region
  $region30: #{conv_block_forward.1} parent=0 // pred_check
    _
  $region31: #{conv_block_forward.1} parent=0 // pred_check_branch
    %655 = sbr.rel (0) target = $region33
  $region32: #{conv_block_forward.1} parent=0 // pred_region
    _
  $region33: #{conv_block_forward.1} parent=0 // pred_fallthru
    _

</llo_original>
